<compile_context>
chip_gen: v7x
topology: tpu7x:2x2x1
jax: 0.10.0
libtpu: 0.0.40
codegen_flags: <defaults>
</compile_context>

<pallas_src>
import functools
import math

import jax
import jax.numpy as jnp
from jax import lax
from jax.experimental import pallas as pl
from jax.experimental.pallas import tpu as pltpu


def _round_up(x, m):
    return ((x + m - 1) // m) * m


def _vmem_limit_bytes(per_step_bytes):
    """Per-generation scoped-VMEM budget with headroom (v7x only has 64 MiB)."""
    try:
        cap = int(pltpu.get_tpu_info().vmem_capacity_bytes)
    except Exception:  # conservative fallback if the query is unavailable
        cap = 64 * 1024 * 1024
    headroom = 8 * 1024 * 1024
    want = max(32 * 1024 * 1024, 6 * int(per_step_bytes))
    return int(max(16 * 1024 * 1024, min(cap - headroom, want)))


# ----------------------------------------------------------------------------
# Pallas kernel 1: LightGCN propagation in transposed feature layout
#   out[e, d] = dst_scale[d] * sum_s feat_t[e, s] * A[d, s]   (dst_is_rows)
#   out[e, d] = dst_scale[d] * sum_s feat_t[e, s] * A[s, d]   (otherwise)
# ----------------------------------------------------------------------------
def _prop_kernel(adj_ref, feat_ref, scale_ref, o_ref, *, rhs_contract_dim,
                 compute_dtype):
    k = pl.program_id(1)
    # int8 0/1 adjacency -> compute dtype; the VPU cast is hidden under the
    # (HBM-bound) adjacency DMA and halves the dominant HBM traffic vs bf16.
    a = adj_ref[...].astype(compute_dtype)
    f = feat_ref[...]
    dn = (((1,), (rhs_contract_dim,)), ((), ()))
    prod = lax.dot_general(f, a, dn, preferred_element_type=jnp.float32)

    @pl.when(k == 0)
    def _():
        o_ref[...] = prod

    @pl.when(k > 0)
    def _():
        o_ref[...] = o_ref[...] + prod

    @pl.when(k == pl.num_programs(1) - 1)
    def _():
        # fold D_dst^-1/2 into the epilogue (output tile already resident)
        o_ref[...] = o_ref[...] * scale_ref[...]


def lg_propagate(adj_p, feat_t, dst_scale, *, dst_is_rows, tile_dst, tile_src,
                 compute_dtype=jnp.bfloat16):
    """adj_p: (U_pad, I_pad) raw 0/1 (int8).  feat_t: (e_pad, n_src_pad) in the
    compute dtype, already scaled by D_src^-1/2.  dst_scale: (1, n_dst_pad)."""
    e_pad, n_src_pad = feat_t.shape
    n_dst_pad = dst_scale.shape[1]
    grid = (n_dst_pad // tile_dst, n_src_pad // tile_src)

    if dst_is_rows:
        # user update: contract the adjacency's column (item) axis
        rhs_contract_dim = 1
        adj_spec = pl.BlockSpec((tile_dst, tile_src), lambda i, k: (i, k))
    else:
        # item update: contract the adjacency's row (user) axis -- same array,
        # swapped index map, no materialised transpose.
        rhs_contract_dim = 0
        adj_spec = pl.BlockSpec((tile_src, tile_dst), lambda i, k: (k, i))

    adj_bytes = jnp.dtype(adj_p.dtype).itemsize
    per_step = (2 * tile_dst * tile_src * adj_bytes        # adjacency (dbl buf)
                + tile_dst * tile_src * 2                  # in-kernel cast
                + 2 * e_pad * tile_src * 2                 # feat tiles
                + 2 * e_pad * tile_dst * 4                 # resident output
                + 2 * tile_dst * 4)                        # scale row

    kern = functools.partial(_prop_kernel, rhs_contract_dim=rhs_contract_dim,
                             compute_dtype=compute_dtype)
    return pl.pallas_call(
        kern,
        out_shape=jax.ShapeDtypeStruct((e_pad, n_dst_pad), jnp.float32),
        grid=grid,
        in_specs=[
            adj_spec,
            pl.BlockSpec((e_pad, tile_src), lambda i, k: (0, k)),
            pl.BlockSpec((1, tile_dst), lambda i, k: (0, i)),
        ],
        out_specs=pl.BlockSpec((e_pad, tile_dst), lambda i, k: (0, i)),
        compiler_params=pltpu.CompilerParams(
            dimension_semantics=("parallel", "arbitrary"),
            vmem_limit_bytes=_vmem_limit_bytes(per_step)),
    )(adj_p, feat_t, dst_scale)


# ----------------------------------------------------------------------------
# Pallas kernel 2: MACR loss (tiled O(B^2) "original" branch, VPU + EUP only)
# ----------------------------------------------------------------------------
_LOG_EPS = math.log(1e-10)


def _softplus(x):
    # stable log(1 + exp(x)) built from plain exp/log (Mosaic-friendly)
    return jnp.maximum(x, 0.0) + jnp.log(1.0 + jnp.exp(-jnp.abs(x)))


def _log_sig(x):
    # log(sigmoid(x) + 1e-10): softplus identity, floored at log(eps) to match
    # the torch eps clamp in the saturated regime.
    return jnp.maximum(-_softplus(-x), _LOG_EPS)


def _log_one_minus_sig(x):
    # log(1 - sigmoid(x) + 1e-10) = log(sigmoid(-x) + 1e-10)
    return jnp.maximum(-_softplus(x), _LOG_EPS)


def _sigmoid(x):
    # exact sigmoid -- only used on O(B) data, accuracy matters for the gates
    return 1.0 / (1.0 + jnp.exp(-x))


def _loss_kernel(uf_ref, ipf_ref, inf_ref, uft_ref, ipft_ref, inft_ref,
                 wu_ref, bu_ref, wi_ref, bi_ref,
                 o_ref,
                 pos_col_ref, neg_col_ref, a_pos_ref, a_neg_ref,
                 acc_ref, aux_ref,
                 *, alpha, beta, inv_e, batch, tile_b):
    i = pl.program_id(0)
    b_pad = pos_col_ref.shape[0]

    # ---- per-row scalars computed ONCE (pure VPU/XLU reductions) -----------
    @pl.when(i == 0)
    def _setup():
        # base scores mean(u . i) as (b_pad, 1) columns (lane reductions)
        pos_col_ref[...] = jnp.sum(uf_ref[...] * ipf_ref[...], axis=1,
                                   keepdims=True) * inv_e
        neg_col_ref[...] = jnp.sum(uf_ref[...] * inf_ref[...], axis=1,
                                   keepdims=True) * inv_e
        # Linear(E,1) branch scores as (1, b_pad) rows: sublane reductions on
        # the transposed features -- no K=1 MXU matmuls anywhere.
        user_row = jnp.sum(uft_ref[...] * wu_ref[...], axis=0,
                           keepdims=True) + bu_ref[...]
        pos_item_row = jnp.sum(ipft_ref[...] * wi_ref[...], axis=0,
                               keepdims=True) + bi_ref[...]
        neg_item_row = jnp.sum(inft_ref[...] * wi_ref[...], axis=0,
                               keepdims=True) + bi_ref[...]
        su = _sigmoid(user_row)
        a_pos_ref[...] = _sigmoid(pos_item_row) * su
        a_neg_ref[...] = _sigmoid(neg_item_row) * su
        # counterfactual branch losses (means over the true batch entries)
        col_valid = lax.broadcasted_iota(jnp.int32, (1, b_pad), 1) < batch
        item_terms = _log_sig(pos_item_row) + _log_one_minus_sig(neg_item_row)
        user_terms = _log_sig(user_row) + _log_one_minus_sig(user_row)
        item_sum = jnp.sum(jnp.where(col_valid, item_terms, 0.0), keepdims=True)
        user_sum = jnp.sum(jnp.where(col_valid, user_terms, 0.0), keepdims=True)
        aux_ref[...] = -(alpha * item_sum + beta * user_sum) / batch
        acc_ref[...] = jnp.zeros_like(acc_ref)

    # ---- tiled O(B^2) "original" branch -------------------------------------
    # torch broadcasting gives S[i, j] = gate[i] * base[j]; summing the
    # transposed matrix T[r, c] = base[r] * gate[c] yields the same total and
    # needs only a column x row VPU broadcast multiply per tile (EUP-bound).
    row_start = pl.multiple_of(i * tile_b, tile_b)
    base_pos = pos_col_ref[pl.ds(row_start, tile_b), :]        # (tile_b, 1)
    base_neg = neg_col_ref[pl.ds(row_start, tile_b), :]
    s_pos = base_pos * a_pos_ref[...]                          # (tile_b, b_pad)
    s_neg = base_neg * a_neg_ref[...]
    # TODO(synk): bf16 softplus/log here would ~2x EUP throughput on v6e/v7x;
    # kept f32 pending a precision validation against the torch reference.
    term = _log_sig(s_pos) + _log_one_minus_sig(s_neg)
    rows = row_start + lax.broadcasted_iota(jnp.int32, (tile_b, b_pad), 0)
    cols = lax.broadcasted_iota(jnp.int32, (tile_b, b_pad), 1)
    valid = jnp.logical_and(rows < batch, cols < batch)
    acc_ref[...] += jnp.sum(jnp.where(valid, term, 0.0), keepdims=True)

    @pl.when(i == pl.num_programs(0) - 1)
    def _finish():
        o_ref[...] = -(acc_ref[...] / (batch * batch)) + aux_ref[...]


def macr_loss(uf, ipf, inf_, w_user, b_user, w_item, b_item, *,
              alpha, beta, tile_b=128):
    batch, e = uf.shape
    tile_b = min(tile_b, _round_up(batch, 8))
    b_pad = _round_up(batch, tile_b)
    pad_rows = lambda x: jnp.pad(x, ((0, b_pad - batch), (0, 0)))
    ufp, ipfp, infp = pad_rows(uf), pad_rows(ipf), pad_rows(inf_)
    # transposed copies: layout plumbing so the kernel can form the (1, B)
    # gate rows with cheap sublane reductions (O(B*E), negligible).
    uft, ipft, inft = ufp.T, ipfp.T, infp.T

    def resident(shape):
        # constant block index -> single-buffer (double-buffering is pure
        # VMEM waste, matters on v7x's 64 MiB).
        return pl.BlockSpec(shape, lambda i: (0, 0), pipeline_mode=pl.Buffered(1))

    kern = functools.partial(_loss_kernel, alpha=float(alpha), beta=float(beta),
                             inv_e=1.0 / e, batch=batch, tile_b=tile_b)
    out = pl.pallas_call(
        kern,
        out_shape=jax.ShapeDtypeStruct((1, 1), jnp.float32),
        grid=(b_pad // tile_b,),
        in_specs=[
            resident((b_pad, e)),   # user feats
            resident((b_pad, e)),   # pos item feats
            resident((b_pad, e)),   # neg item feats
            resident((e, b_pad)),   # user feats (transposed)
            resident((e, b_pad)),   # pos item feats (transposed)
            resident((e, b_pad)),   # neg item feats (transposed)
            resident((e, 1)),       # user branch weight (E,1)
            resident((1, 1)),       # user branch bias
            resident((e, 1)),       # item branch weight (E,1)
            resident((1, 1)),       # item branch bias
        ],
        out_specs=pl.BlockSpec((1, 1), lambda i: (0, 0)),
        scratch_shapes=[
            pltpu.VMEM((b_pad, 1), jnp.float32),   # pos base column
            pltpu.VMEM((b_pad, 1), jnp.float32),   # neg base column
            pltpu.VMEM((1, b_pad), jnp.float32),   # pos gate row
            pltpu.VMEM((1, b_pad), jnp.float32),   # neg gate row
            pltpu.VMEM((1, 1), jnp.float32),       # pair-term accumulator
            pltpu.VMEM((1, 1), jnp.float32),       # branch-loss aux
        ],
        compiler_params=pltpu.CompilerParams(
            dimension_semantics=("arbitrary",)),
    )(ufp, ipfp, infp, uft, ipft, inft, w_user, b_user, w_item, b_item)
    return out[0, 0]


# ----------------------------------------------------------------------------
# MACR model (glue in plain JAX, hot paths in Pallas)
# ----------------------------------------------------------------------------
class MACRPallas:
    def __init__(self, num_users, num_items, embedding_size, num_layers,
                 dropout, batch_size, alpha, beta, key,
                 compute_dtype=jnp.bfloat16, adj_dtype=jnp.int8,
                 tile_users=512, tile_items=512):
        self.n_user = num_users
        self.n_item = num_items
        self.emb = embedding_size
        self.num_layers = num_layers
        self.dropout = dropout
        self.batch_size = batch_size
        self.alpha = alpha
        self.beta = beta
        self.compute_dtype = compute_dtype
        # TODO(synk): for weighted adjacencies set adj_dtype=jnp.bfloat16
        # (int8 storage assumes the LGConv-style unweighted 0/1 graph).
        self.adj_dtype = adj_dtype
        self.tile_users = tile_users
        self.tile_items = tile_items

        stdv = 1.0 / math.sqrt(embedding_size)
        ks = jax.random.split(key, 7)
        u = lambda k, shape: jax.random.uniform(k, shape, jnp.float32, -stdv, stdv)
        self.embeddings_user = u(ks[0], (num_users, embedding_size))
        self.embeddings_item = u(ks[1], (num_items, embedding_size))
        # nn.Linear(E,1): weight stored transposed as (E,1), bias as (1,1)
        self.w_user = u(ks[2], (embedding_size, 1))
        self.b_user = u(ks[3], (1, 1))
        self.w_item = u(ks[4], (embedding_size, 1))
        self.b_item = u(ks[5], (1, 1))
        self._drop_key = ks[6]

    def _dropout(self, x, key):
        # TODO(synk): cannot bit-match torch's dropout RNG; semantics match for p=0
        if self.dropout <= 0.0:
            return x
        keep = 1.0 - self.dropout
        mask = jax.random.bernoulli(key, keep, x.shape)
        return jnp.where(mask, x / keep, 0.0)

    def get_feature(self, adj):
        n_user, n_item = adj.shape
        e = self.emb
        cdt = self.compute_dtype

        # ---- one-time per forward: tiling, degree norms, padded 1-byte A ----
        tile_u = min(self.tile_users, _round_up(n_user, 128))
        tile_i = min(self.tile_items, _round_up(n_item, 128))
        u_pad = _round_up(n_user, tile_u)
        i_pad = _round_up(n_item, tile_i)
        e_pad = _round_up(e, 16)

        deg_u = jnp.maximum(jnp.sum(adj, axis=1), 1.0)          # (U,)
        deg_i = jnp.maximum(jnp.sum(adj, axis=0), 1.0)          # (I,)
        su = jnp.pad(deg_u ** -0.5, (0, u_pad - n_user)).reshape(1, u_pad)
        si = jnp.pad(deg_i ** -0.5, (0, i_pad - n_item)).reshape(1, i_pad)

        # raw 0/1 adjacency at 1 byte/element, padded + cast ONCE per forward
        # (normalisation is applied outside the matmul).
        adj_p = jnp.pad(adj.astype(self.adj_dtype),
                        ((0, u_pad - n_user), (0, i_pad - n_item)))

        # Features stay in transposed (E, N) layout across the whole loop so
        # both propagation directions are standard / rhs-transposed matmuls
        # over the SAME adjacency array (A^T is never materialised).
        hu_t = jnp.pad(self.embeddings_user.T,
                       ((0, e_pad - e), (0, u_pad - n_user)))
        hi_t = jnp.pad(self.embeddings_item.T,
                       ((0, e_pad - e), (0, i_pad - n_item)))

        users_acc, items_acc = hu_t, hi_t
        key = self._drop_key
        for _ in range(self.num_layers):
            hu_ego = hu_t
            # hu_new = D_u^-1/2 A (D_i^-1/2 hi)
            hu_t = lg_propagate(adj_p, (hi_t * si).astype(cdt), su,
                                dst_is_rows=True, tile_dst=tile_u,
                                tile_src=tile_i, compute_dtype=cdt)
            # hi_new = D_i^-1/2 A^T (D_u^-1/2 hu_ego)
            hi_t = lg_propagate(adj_p, (hu_ego * su).astype(cdt), si,
                                dst_is_rows=False, tile_dst=tile_i,
                                tile_src=tile_u, compute_dtype=cdt)
            key, k1, k2 = jax.random.split(key, 3)
            hu_t = self._dropout(hu_t, k1)
            hi_t = self._dropout(hi_t, k2)
            users_acc = users_acc + hu_t
            items_acc = items_acc + hi_t
        # TODO(synk): fusing both directions into one kernel (stream each A
        # tile once, drive both MXU products) would halve adjacency traffic
        # per layer; needs dual resident accumulators, left as follow-up.
        inv = 1.0 / (self.num_layers + 1)
        users_feat = (users_acc * inv).T[:n_user, :e]
        items_feat = (items_acc * inv).T[:n_item, :e]
        return users_feat, items_feat

    def loss(self, user, item_p, item_n):
        uf = self.users_feat[user]
        ipf = self.items_feat[item_p]
        inf_ = self.items_feat[item_n]
        mf_loss = macr_loss(uf, ipf, inf_, self.w_user, self.b_user,
                            self.w_item, self.b_item,
                            alpha=self.alpha, beta=self.beta)
        return {"mf_loss": mf_loss}

    def forward(self, user, item_p, item_n, adj):
        self.users_feat, self.items_feat = self.get_feature(adj)
        loss_dict = self.loss(user, item_p, item_n)
        # PyTorch forward returns None; we return the loss dict for verification.
        return loss_dict


if __name__ == "__main__":
    key = jax.random.PRNGKey(0)
    kp, kg, ku, kip, kin = jax.random.split(key, 5)

    num_users, num_items, emb_size = 16, 24, 32
    num_layers, batch = 2, 8

    model = MACRPallas(num_users, num_items, emb_size, num_layers,
                       dropout=0.0, batch_size=batch, alpha=0.5, beta=0.1,
                       key=kp)

    # dense bipartite interaction adjacency (user x item), values in {0,1}
    adj = jax.random.bernoulli(kg, 0.3, (num_users, num_items)).astype(jnp.float32)
    user = jax.random.randint(ku, (batch,), 0, num_users)
    item_p = jax.random.randint(kip, (batch,), 0, num_items)
    item_n = jax.random.randint(kin, (batch,), 0, num_items)

    out = model.forward(user, item_p, item_n, adj)
    loss = jax.block_until_ready(out["mf_loss"])
    assert bool(jnp.isfinite(loss)), "loss is not finite"
    print("KERNEL_OK")
</pallas_src>

<mosaic_0001>
module attributes {stable_mosaic.version = 11 : i64} {
  func.func @_prop_kernel(%arg0: i32, %arg1: i32, %arg2: memref<128x128xi8, #tpu.memory_space<vmem>>, %arg3: memref<32x128xbf16, #tpu.memory_space<vmem>>, %arg4: memref<1x128xf32, #tpu.memory_space<vmem>>, %arg5: memref<32x128xf32, #tpu.memory_space<vmem>>) attributes {dimension_semantics = [#tpu.dimension_semantics<parallel>, #tpu.dimension_semantics<arbitrary>], iteration_bounds = array<i64: 1, 1>, scalar_prefetch = 0 : i64, scratch_operands = 0 : i64, tpu.core_type = #tpu.core_type<tc>, window_params = [{transform_indices = @transform_0, window_bounds = array<i64: 128, 128>}, {transform_indices = @transform_1, window_bounds = array<i64: 32, 128>}, {transform_indices = @transform_2, window_bounds = array<i64: 1, 128>}, {transform_indices = @transform_3, window_bounds = array<i64: 32, 128>}]} {
    %c0 = arith.constant 0 : index
    %c0_0 = arith.constant 0 : index
    %0 = vector.load %arg2[%c0, %c0_0] : memref<128x128xi8, #tpu.memory_space<vmem>>, vector<128x128xi8>
    %1 = arith.sitofp %0 : vector<128x128xi8> to vector<128x128xbf16>
    %c0_1 = arith.constant 0 : index
    %c0_2 = arith.constant 0 : index
    %2 = vector.load %arg3[%c0_1, %c0_2] : memref<32x128xbf16, #tpu.memory_space<vmem>>, vector<32x128xbf16>
    %cst = arith.constant dense<0.000000e+00> : vector<32x128xf32>
    %3 = tpu.matmul %2, %1, %cst {dimension_numbers = #tpu.dot_dimension_numbers<[1], [1], [0], [0], [0, 0, 1, 0], [], []>} : vector<32x128xbf16>, vector<128x128xbf16>, vector<32x128xf32> -> vector<32x128xf32>
    %c0_i32 = arith.constant 0 : i32
    %4 = arith.cmpi eq, %arg1, %c0_i32 : i32
    %5 = arith.extui %4 : i1 to i32
    %c0_i32_3 = arith.constant 0 : i32
    %6 = arith.cmpi ne, %5, %c0_i32_3 : i32
    scf.if %6 {
      %c0_8 = arith.constant 0 : index
      %c0_9 = arith.constant 0 : index
      %13 = vector.load %arg5[%c0_8, %c0_9] : memref<32x128xf32, #tpu.memory_space<vmem>>, vector<32x128xf32>
      tpu.vector_store %arg5[%c0_8, %c0_9], %3 {strides = array<i32>} : memref<32x128xf32, #tpu.memory_space<vmem>>, vector<32x128xf32>,
    } else {
    }
    %c0_i32_4 = arith.constant 0 : i32
    %7 = arith.cmpi sgt, %arg1, %c0_i32_4 : i32
    %8 = arith.extui %7 : i1 to i32
    %c0_i32_5 = arith.constant 0 : i32
    %9 = arith.cmpi ne, %8, %c0_i32_5 : i32
    scf.if %9 {
      %c0_8 = arith.constant 0 : index
      %c0_9 = arith.constant 0 : index
      %13 = vector.load %arg5[%c0_8, %c0_9] : memref<32x128xf32, #tpu.memory_space<vmem>>, vector<32x128xf32>
      %14 = arith.addf %13, %3 : vector<32x128xf32>
      %c0_10 = arith.constant 0 : index
      %c0_11 = arith.constant 0 : index
      %15 = vector.load %arg5[%c0_10, %c0_11] : memref<32x128xf32, #tpu.memory_space<vmem>>, vector<32x128xf32>
      tpu.vector_store %arg5[%c0_10, %c0_11], %14 {strides = array<i32>} : memref<32x128xf32, #tpu.memory_space<vmem>>, vector<32x128xf32>,
    } else {
    }
    %c0_i32_6 = arith.constant 0 : i32
    %10 = arith.cmpi eq, %arg1, %c0_i32_6 : i32
    %11 = arith.extui %10 : i1 to i32
    %c0_i32_7 = arith.constant 0 : i32
    %12 = arith.cmpi ne, %11, %c0_i32_7 : i32
    scf.if %12 {
      %c0_8 = arith.constant 0 : index
      %c0_9 = arith.constant 0 : index
      %13 = vector.load %arg5[%c0_8, %c0_9] : memref<32x128xf32, #tpu.memory_space<vmem>>, vector<32x128xf32>
      %c0_10 = arith.constant 0 : index
      %c0_11 = arith.constant 0 : index
      %14 = vector.load %arg4[%c0_10, %c0_11] : memref<1x128xf32, #tpu.memory_space<vmem>>, vector<1x128xf32>
      %15 = vector.broadcast %14 : vector<1x128xf32> to vector<32x128xf32>
      %16 = arith.mulf %13, %15 : vector<32x128xf32>
      %c0_12 = arith.constant 0 : index
      %c0_13 = arith.constant 0 : index
      %17 = vector.load %arg5[%c0_12, %c0_13] : memref<32x128xf32, #tpu.memory_space<vmem>>, vector<32x128xf32>
      tpu.vector_store %arg5[%c0_12, %c0_13], %16 {strides = array<i32>} : memref<32x128xf32, #tpu.memory_space<vmem>>, vector<32x128xf32>,
    } else {
    }
    return
  }
  func.func @transform_0(%arg0: i32, %arg1: i32) -> (i32, i32) {
    %c0_i32 = arith.constant 0 : i32
    return %arg0, %arg1 : i32, i32
  }
  func.func @transform_1(%arg0: i32, %arg1: i32) -> (i32, i32) {
    %c0_i32 = arith.constant 0 : i32
    %c0_i32_0 = arith.constant 0 : i32
    return %c0_i32, %arg1 : i32, i32
  }
  func.func @transform_2(%arg0: i32, %arg1: i32) -> (i32, i32) {
    %c0_i32 = arith.constant 0 : i32
    %c0_i32_0 = arith.constant 0 : i32
    return %c0_i32, %arg0 : i32, i32
  }
  func.func @transform_3(%arg0: i32, %arg1: i32) -> (i32, i32) {
    %c0_i32 = arith.constant 0 : i32
    %c0_i32_0 = arith.constant 0 : i32
    return %c0_i32, %arg0 : i32, i32
  }
}

</mosaic_0001>

<llo_original>
// kernel: tpu_custom_call.1
$region0: #{tpu_custom_call.1}
  #allocation0 [shape = 'u32[]', space=smem, size = 0x4, offset = 0x4, fixed_abs, tag = 'smem constant byte address 0x4 - core index']
  #allocation1 [shape = 'u32[144,128]{1,0:T(1,128)}', space=vmem, size = 0x12000, scoped, tag = 'internal scratch']
  %s0 = inlined_call_operand.hbm [shape: s8[128,128], index: 0, kind: input, shape index: {}]
  %s1 = inlined_call_operand.hbm [shape: bf16[32,128], index: 1, kind: input, shape index: {}]
  %s2 = inlined_call_operand.vmem [shape: f32[1,128], index: 2, kind: input, shape index: {}]
  %s3 = inlined_call_operand.hbm [shape: f32[32,128], index: 3, kind: output, shape index: {}]
  %s4 = sld [smem:[#allocation0]]
  $region42: #{tpu_custom_call.1} parent=0
    _
  %s6 = ssub.s32 1, %s4
  %s7 = scalar_select 0, %s6, %s4
  $region1: #{tpu_custom_call.1} parent=0
    #allocation2 [shape = 'u8[16384]{0}', space=vmem, size = 0x4000, scoped, tag = 'input window, operand 0, single buffered']
    #allocation3 [shape = 's32[1]{0}', space=sflag, size = 0x4, scoped, tag = 'scoped memory for tpu_custom_call.1']
    #allocation4 [shape = 's32[1]{0}', space=sflag, size = 0x4, scoped, tag = 'scoped memory for tpu_custom_call.1']
    #allocation5 [shape = 'u8[8192]{0}', space=vmem, size = 0x2000, scoped, tag = 'input window, operand 1, single buffered']
    #allocation6 [shape = 's32[1]{0}', space=sflag, size = 0x4, scoped, tag = 'scoped memory for tpu_custom_call.1']
    #allocation7 [shape = 'u8[16384]{0}', space=vmem, size = 0x4000, scoped, tag = 'output window, operand 0, single buffered']
    %8 = vsyncpa [#allocation3], 0
    %9 = vsyncpa [#allocation6], 0
    %10 = vsyncpa [#allocation4], 0
    // Predicated region
    $region2: #{tpu_custom_call.1} parent=1 // pred_check
      _
    $region3: #{tpu_custom_call.1} parent=1 // pred_check_branch
      %12 = sbr.rel (0) target = $region5
    $region4: #{tpu_custom_call.1} parent=1 // pred_region
      %s14 = ssub.s32 512, 512
      %15 = vsyncadd [#allocation3], %s14
      %s16 = sshll.u32 [#allocation2], 4
      %s17 = int_to_ptr.vmem [resolvable:$true] %s16
      %22 = dma.hbm_to_vmem [thread:$0]  %s0, 512, %s17, [#allocation3], 128, 128, 8
    $region5: #{tpu_custom_call.1} parent=1 // pred_fallthru
      _
    // Predicated region
    $region6: #{tpu_custom_call.1} parent=1 // pred_check
      _
    $region7: #{tpu_custom_call.1} parent=1 // pred_check_branch
      %24 = sbr.rel (0) target = $region9
    $region8: #{tpu_custom_call.1} parent=1 // pred_region
      %s26 = ssub.s32 256, 256
      %27 = vsyncadd [#allocation6], %s26
      %s28 = sshll.u32 [#allocation5], 4
      %s29 = int_to_ptr.vmem [resolvable:$true] %s28
      %34 = dma.hbm_to_vmem [thread:$0]  %s1, 256, %s29, [#allocation6], 64, 64, 4
    $region9: #{tpu_custom_call.1} parent=1 // pred_fallthru
      _
    // Predicated region
    $region10: #{tpu_custom_call.1} parent=1 // pred_check
      _
    $region11: #{tpu_custom_call.1} parent=1 // pred_check_branch
      %36 = sbr.rel (0) target = $region13
    $region12: #{tpu_custom_call.1} parent=1 // pred_region
      _
    $region13: #{tpu_custom_call.1} parent=1 // pred_fallthru
      _
    // Predicated region
    $region14: #{tpu_custom_call.1} parent=1 // pred_check
      _
    $region15: #{tpu_custom_call.1} parent=1 // pred_check_branch
      %38 = sbr.rel (0) target = $region17
    $region16: #{tpu_custom_call.1} parent=1 // pred_region
      %39 = dma.done [#allocation3], 512
    $region17: #{tpu_custom_call.1} parent=1 // pred_fallthru
      _
    // Predicated region
    $region18: #{tpu_custom_call.1} parent=1 // pred_check
      _
    $region19: #{tpu_custom_call.1} parent=1 // pred_check_branch
      %41 = sbr.rel (0) target = $region21
    $region20: #{tpu_custom_call.1} parent=1 // pred_region
      %42 = dma.done [#allocation6], 256
    $region21: #{tpu_custom_call.1} parent=1 // pred_fallthru
      _
    %v44 = vld [vmem:[#allocation2] sm:$0xff]
    %v45 = vld [vmem:[#allocation2 + $0x8] sm:$0xff]
    %v46 = vld [vmem:[#allocation2 + $0x10] sm:$0xff]
    %v47 = vld [vmem:[#allocation2 + $0x18] sm:$0xff]
    %v48 = vunpack.c.l.s8.bf16 %v44
    %v49 = vunpack.c.h.s8.bf16 %v44
    %v50 = vunpack.c.l.s8.bf16 %v45
    %v51 = vunpack.c.h.s8.bf16 %v45
    %v52 = vunpack.c.l.s8.bf16 %v46
    %v53 = vunpack.c.h.s8.bf16 %v46
    %v54 = vunpack.c.l.s8.bf16 %v47
    %v55 = vunpack.c.h.s8.bf16 %v47
    %v56 = vld [vmem:[#allocation5] sm:$0xf]
    %v57 = vld [vmem:[#allocation5 + $0x4] sm:$0xf]
    %v58 = vld [vmem:[#allocation5 + $0x8] sm:$0xf]
    %v59 = vld [vmem:[#allocation5 + $0xc] sm:$0xf]
    %v64 = vunpack.c.l.b16 %v56
    %v65 = vunpack.c.l.b16 %v57
    %v66 = vunpack.c.l.b16 %v58
    %v67 = vunpack.c.l.b16 %v59
    %v68 = vpack.c.b16 %v65, %v64
    %v69 = vpack.c.b16 %v67, %v66
    %72 = vmatprep.subr.bf16.mxu0 0
    %73 = vmatpush1.bf16.xpose.msra.mxu0 %v48
    %74 = vmatprep.subr.bf16.mxu0 0
    %75 = vmatpush1.bf16.xpose.msra.mxu0 %v49
    %76 = vmatprep.subr.bf16.mxu0 0
    %77 = vmatpush1.bf16.xpose.msra.mxu0 %v50
    %78 = vmatprep.subr.bf16.mxu0 0
    %79 = vmatpush1.bf16.xpose.msra.mxu0 %v51
    %80 = vmatprep.subr.bf16.mxu0 0
    %81 = vmatpush1.bf16.xpose.msra.mxu0 %v52
    %82 = vmatprep.subr.bf16.mxu0 0
    %83 = vmatpush1.bf16.xpose.msra.mxu0 %v53
    %84 = vmatprep.subr.bf16.mxu0 0
    %85 = vmatpush1.bf16.xpose.msra.mxu0 %v54
    %86 = vmatprep.subr.bf16.mxu0 0
    %87 = vmatpush1.bf16.xpose.msra.mxu0 %v55
    %88 = vmatprep.subr.bf16.mxu0 0
    %89 = vmatpush1.bf16.xpose.msra.mxu0 0
    %90 = vmatprep.subr.bf16.mxu0 0
    %91 = vmatpush1.bf16.xpose.msra.mxu0 0
    %92 = vmatprep.subr.bf16.mxu0 0
    %93 = vmatpush1.bf16.xpose.msra.mxu0 0
    %94 = vmatprep.subr.bf16.mxu0 0
    %95 = vmatpush1.bf16.xpose.msra.mxu0 0
    %96 = vmatprep.subr.bf16.mxu0 0
    %97 = vmatpush1.bf16.xpose.msra.mxu0 0
    %98 = vmatprep.subr.bf16.mxu0 0
    %99 = vmatpush1.bf16.xpose.msra.mxu0 0
    %100 = vmatprep.subr.bf16.mxu0 0
    %101 = vmatpush1.bf16.xpose.msra.mxu0 0
    %102 = vmatprep.subr.bf16.mxu0 0
    %103 = vmatpush1.bf16.xpose.msra.mxu0 0
    %104 = vmatprep.mubr.bf16.mxu0 0
    %105 = vmatmul.mubr.bf16.gmra.mrb[0].mxu0 %v68
    %v106 = vpop.f32.mrb[0].mxu0
    %v107 = vadd.f32 0.0, %v106
    %v108 = vpop.f32.mrb[0].mxu0
    %v109 = vpop.f32.mrb[0].mxu0
    %v110 = vadd.f32 0.0, %v109
    %v111 = vpop.f32.mrb[0].mxu0
    %112 = vmatprep.mubr.bf16.mxu0 0
    %113 = vmatmul.mubr.bf16.gmra.mrb[0].mxu0 %v69
    %v114 = vpop.f32.mrb[0].mxu0
    %v115 = vadd.f32 0.0, %v114
    %v116 = vpop.f32.mrb[0].mxu0
    %v117 = vpop.f32.mrb[0].mxu0
    %v118 = vadd.f32 0.0, %v117
    %v119 = vpop.f32.mrb[0].mxu0
    %120 = vdwg.mxu0
    %p121 = scmp.eq.s32.totalorder 0, 0
    // Predicated region
    $region22: #{tpu_custom_call.1} parent=1 // pred_check
      %p122 = pneg %p121
    $region23: #{tpu_custom_call.1} parent=1 // pred_check_branch
      %124 = sbr.rel (%p122) target = $region25
    $region24: #{tpu_custom_call.1} parent=1 // pred_region
      %125 = vst [vmem:[#allocation7] sm:$0xff] %v107
      %126 = vst [vmem:[#allocation7 + $0x8] sm:$0xff] %v110
      %127 = vst [vmem:[#allocation7 + $0x10] sm:$0xff] %v115
      %128 = vst [vmem:[#allocation7 + $0x18] sm:$0xff] %v118
    $region25: #{tpu_custom_call.1} parent=1 // pred_fallthru
      _
    %p129 = scmp.gt.s32.totalorder 0, 0
    // Predicated region
    $region26: #{tpu_custom_call.1} parent=1 // pred_check
      %p130 = pneg %p129
    $region27: #{tpu_custom_call.1} parent=1 // pred_check_branch
      %132 = sbr.rel (%p130) target = $region29
    $region28: #{tpu_custom_call.1} parent=1 // pred_region
      %v133 = vld [vmem:[#allocation7] sm:$0xff]
      %v134 = vld [vmem:[#allocation7 + $0x8] sm:$0xff]
      %v135 = vld [vmem:[#allocation7 + $0x10] sm:$0xff]
      %v136 = vld [vmem:[#allocation7 + $0x18] sm:$0xff]
      %v137 = vadd.f32 %v133, %v107
      %v138 = vadd.f32 %v134, %v110
      %v139 = vadd.f32 %v135, %v115
      %v140 = vadd.f32 %v136, %v118
      %141 = vst [vmem:[#allocation7] sm:$0xff] %v137
      %142 = vst [vmem:[#allocation7 + $0x8] sm:$0xff] %v138
      %143 = vst [vmem:[#allocation7 + $0x10] sm:$0xff] %v139
      %144 = vst [vmem:[#allocation7 + $0x18] sm:$0xff] %v140
    $region29: #{tpu_custom_call.1} parent=1 // pred_fallthru
      _
    // Predicated region
    $region30: #{tpu_custom_call.1} parent=1 // pred_check
      %p145 = pneg %p121
    $region31: #{tpu_custom_call.1} parent=1 // pred_check_branch
      %147 = sbr.rel (%p145) target = $region33
    $region32: #{tpu_custom_call.1} parent=1 // pred_region
      %v148 = vld [vmem:[#allocation7] sm:$0xff]
      %v149 = vld [vmem:[#allocation7 + $0x8] sm:$0xff]
      %v150 = vld [vmem:[#allocation7 + $0x10] sm:$0xff]
      %v151 = vld [vmem:[#allocation7 + $0x18] sm:$0xff]
      %v152 = vld [vmem:[%s2] sm:$0x1]
      %v154 = vlaneseq
      %v155 = vshrl.u32 %v154, 7
      %v156 = vsub.s32 0, %v155
      %v157 = vrot.slane %v152, %v156
      %v159 = vmul.f32 %v148, %v157
      %v160 = vmul.f32 %v149, %v157
      %v161 = vmul.f32 %v150, %v157
      %v162 = vmul.f32 %v151, %v157
      %163 = vst [vmem:[#allocation7] sm:$0xff] %v159
      %164 = vst [vmem:[#allocation7 + $0x8] sm:$0xff] %v160
      %165 = vst [vmem:[#allocation7 + $0x10] sm:$0xff] %v161
      %166 = vst [vmem:[#allocation7 + $0x18] sm:$0xff] %v162
    $region33: #{tpu_custom_call.1} parent=1 // pred_fallthru
      _
    // Predicated region
    $region34: #{tpu_custom_call.1} parent=1 // pred_check
      _
    $region35: #{tpu_custom_call.1} parent=1 // pred_check_branch
      %168 = sbr.rel (0) target = $region37
    $region36: #{tpu_custom_call.1} parent=1 // pred_region
      %s170 = ssub.s32 512, 512
      %171 = vsyncadd [#allocation4], %s170
      %s172 = sshll.u32 [#allocation7], 4
      %s173 = int_to_ptr.vmem [resolvable:$true] %s172
      %178 = dma.vmem_to_hbm [thread:$0]  %s173, 512, %s3, [#allocation4], 128, 128, 8
    $region37: #{tpu_custom_call.1} parent=1 // pred_fallthru
      _
    // Predicated region
    $region38: #{tpu_custom_call.1} parent=1 // pred_check
      _
    $region39: #{tpu_custom_call.1} parent=1 // pred_check_branch
      %180 = sbr.rel (0) target = $region41
    $region40: #{tpu_custom_call.1} parent=1 // pred_region
      %181 = dma.done [#allocation4], 512
    $region41: #{tpu_custom_call.1} parent=1 // pred_fallthru
      _
    %182 = vsyncpa [#allocation3], 1
    %183 = vsyncpa [#allocation6], 1
    %184 = vsyncpa [#allocation4], 1

</llo_original>
